<compile_context>
chip_gen: v7x
topology: tpu7x:2x2x1
jax: 0.10.0
libtpu: 0.0.40
codegen_flags: <defaults>
</compile_context>

<pallas_src>
import jax
import jax.numpy as jnp
from jax.experimental import pallas as pl
from jax.experimental.pallas import tpu as pltpu


def _mlp_kernel(x_ref, w1t_ref, b1_ref, w2t_ref, b2_ref, o_ref):
    # x_ref  : (tm, Din)   bf16 row tile of tokens
    # w1t_ref: (Din, H)    bf16 fc1 weight, pre-transposed (resident)
    # b1_ref : (1, H)      f32  fc1 bias
    # w2t_ref: (H, Dout)   bf16 fc2 weight, pre-transposed (resident)
    # b2_ref : (1, Dout)   f32  fc2 bias
    # o_ref  : (tm, Dout)  bf16 output row tile
    x = x_ref[...]

    # fc1: bf16 MXU matmul with f32 accumulation, epilogue (bias + ReLU) in f32.
    h = jnp.dot(x, w1t_ref[...], preferred_element_type=jnp.float32)
    h = jnp.maximum(h + b1_ref[...], 0.0)

    # fc2: cast the hidden activation back to bf16 for the MXU, accumulate f32.
    h = h.astype(w2t_ref.dtype)
    o = jnp.dot(h, w2t_ref[...], preferred_element_type=jnp.float32)
    o_ref[...] = (o + b2_ref[...]).astype(o_ref.dtype)


def _round_up(a, b):
    return (a + b - 1) // b * b


def prepare_mlp_params(w1, b1, w2, b2, *, param_dtype=jnp.bfloat16):
    """One-time parameter prep (transpose + cast); do NOT pay this per call.

    w1: (H, Din), b1: (H,), w2: (Dout, H), b2: (Dout,)  -- PyTorch Linear layout.
    Returns w1t (Din, H) bf16, b1r (1, H) f32, w2t (H, Dout) bf16, b2r (1, Dout) f32.
    """
    w1t = jnp.transpose(jnp.asarray(w1)).astype(param_dtype)
    w2t = jnp.transpose(jnp.asarray(w2)).astype(param_dtype)
    b1r = jnp.asarray(b1).reshape(1, -1).astype(jnp.float32)
    b2r = jnp.asarray(b2).reshape(1, -1).astype(jnp.float32)
    return w1t, b1r, w2t, b2r


def mlp_pallas(x, w1t, b1r, w2t, b2r, *, block_m=512):
    """x: (..., Din) bf16/f32.  Params already prepared by prepare_mlp_params."""
    orig_shape = x.shape
    d_in = orig_shape[-1]
    h_dim = w1t.shape[1]
    d_out = w2t.shape[1]
    out_dtype = x.dtype

    # Flatten leading dims -> tokens on sublanes, features on lanes (free view).
    x2 = x.reshape(-1, d_in)
    M = x2.shape[0]

    # Row tile: multiple of 8 (sublane), capped by block_m.  Clamp so the grid
    # has >= 2 steps whenever possible (megacore parallelism on v7x).
    m_r8 = _round_up(M, 8)
    tm = min(block_m, m_r8)
    if m_r8 // tm < 2 and m_r8 >= 16:
        tm = _round_up(-(-m_r8 // 2), 8)

    # Only pad if tm does not divide M (avoids an extra HBM read+write of x).
    m_pad = _round_up(M, tm)
    if m_pad != M:
        x2 = jnp.pad(x2, ((0, m_pad - M), (0, 0)))

    grid = (m_pad // tm,)

    # Generation-aware VMEM budget: actual footprint (double-buffered x/out
    # tiles + resident weights/biases) with headroom, capped at 48 MiB so we
    # never request all of v7x's 64 MiB physical VMEM.
    x_bytes = jnp.dtype(x2.dtype).itemsize
    w_bytes = jnp.dtype(w1t.dtype).itemsize
    o_bytes = jnp.dtype(out_dtype).itemsize
    footprint = (
        2 * tm * d_in * x_bytes
        + 2 * tm * d_out * o_bytes
        + 2 * (d_in * h_dim + h_dim * d_out) * w_bytes
        + 2 * (h_dim + d_out) * 4
    )
    vmem_limit = int(min(48 << 20, max(2 * footprint + (4 << 20), 16 << 20)))

    out = pl.pallas_call(
        _mlp_kernel,
        out_shape=jax.ShapeDtypeStruct((m_pad, d_out), out_dtype),
        grid=grid,
        in_specs=[
            pl.BlockSpec((tm, d_in), lambda i: (i, 0)),
            pl.BlockSpec((d_in, h_dim), lambda i: (0, 0)),   # resident across grid
            pl.BlockSpec((1, h_dim), lambda i: (0, 0)),
            pl.BlockSpec((h_dim, d_out), lambda i: (0, 0)),  # resident across grid
            pl.BlockSpec((1, d_out), lambda i: (0, 0)),
        ],
        out_specs=pl.BlockSpec((tm, d_out), lambda i: (i, 0)),
        compiler_params=pltpu.CompilerParams(
            dimension_semantics=("parallel",),
            vmem_limit_bytes=vmem_limit,
        ),
    )(x2, w1t, b1r, w2t, b2r)

    out = out[:M]
    return out.reshape(orig_shape[:-1] + (d_out,))


def mlp_reference(x, w1, b1, w2, b2):
    """Plain-JAX f32 reference matching the PyTorch Mlp forward (dropout p=0)."""
    h = jnp.maximum(jnp.einsum("...i,hi->...h", x, w1) + b1, 0.0)
    return jnp.einsum("...h,oh->...o", h, w2) + b2


if __name__ == "__main__":
    # Small shapes consistent with the module: tokens (B, N, C) with
    # hidden_features = in_features // 4, out_features = in_features.
    B, N, D = 2, 64, 128
    H = D // 4  # 32

    key = jax.random.PRNGKey(0)
    kx, k1, k2, k3, k4 = jax.random.split(key, 5)
    x_f32 = jax.random.normal(kx, (B, N, D), jnp.float32)
    w1 = jax.random.normal(k1, (H, D), jnp.float32) * 0.05
    b1 = jax.random.normal(k2, (H,), jnp.float32) * 0.05
    w2 = jax.random.normal(k3, (D, H), jnp.float32) * 0.05
    b2 = jax.random.normal(k4, (D,), jnp.float32) * 0.05

    # Activations in bf16 (the kernel's intended operating dtype).
    x = x_f32.astype(jnp.bfloat16)

    # One-time parameter prep (outside the per-call path).
    params = prepare_mlp_params(w1, b1, w2, b2)

    out = mlp_pallas(x, *params)
    out = jax.block_until_ready(out)

    # Reference in f32 on the exact bf16-rounded inputs the kernel saw.
    ref = mlp_reference(x.astype(jnp.float32), w1, b1, w2, b2)
    assert out.shape == (B, N, D)
    max_err = float(jnp.max(jnp.abs(out.astype(jnp.float32) - ref)))
    if max_err > 5e-2:  # bf16 operand / output quantization tolerance
        raise AssertionError(f"mismatch vs reference: max |err| = {max_err}")
    print("KERNEL_OK")
</pallas_src>

<mosaic_0001>
module attributes {stable_mosaic.version = 11 : i64} {
  func.func @_mlp_kernel(%arg0: i32, %arg1: memref<64x128xbf16, #tpu.memory_space<vmem>>, %arg2: memref<128x32xbf16, #tpu.memory_space<vmem>>, %arg3: memref<1x32xf32, #tpu.memory_space<vmem>>, %arg4: memref<32x128xbf16, #tpu.memory_space<vmem>>, %arg5: memref<1x128xf32, #tpu.memory_space<vmem>>, %arg6: memref<64x128xbf16, #tpu.memory_space<vmem>>) attributes {dimension_semantics = [#tpu.dimension_semantics<parallel>], iteration_bounds = array<i64: 2>, scalar_prefetch = 0 : i64, scratch_operands = 0 : i64, tpu.core_type = #tpu.core_type<tc>, window_params = [{transform_indices = @transform_0, window_bounds = array<i64: 64, 128>}, {pipeline_mode = #tpu.pipeline_mode<synchronous>, transform_indices = @transform_1, window_bounds = array<i64: 128, 32>}, {pipeline_mode = #tpu.pipeline_mode<synchronous>, transform_indices = @transform_2, window_bounds = array<i64: 1, 32>}, {pipeline_mode = #tpu.pipeline_mode<synchronous>, transform_indices = @transform_3, window_bounds = array<i64: 32, 128>}, {pipeline_mode = #tpu.pipeline_mode<synchronous>, transform_indices = @transform_4, window_bounds = array<i64: 1, 128>}, {transform_indices = @transform_5, window_bounds = array<i64: 64, 128>}]} {
    %c0 = arith.constant 0 : index
    %c0_0 = arith.constant 0 : index
    %0 = vector.load %arg1[%c0, %c0_0] : memref<64x128xbf16, #tpu.memory_space<vmem>>, vector<64x128xbf16>
    %c0_1 = arith.constant 0 : index
    %c0_2 = arith.constant 0 : index
    %1 = vector.load %arg2[%c0_1, %c0_2] : memref<128x32xbf16, #tpu.memory_space<vmem>>, vector<128x32xbf16>
    %cst = arith.constant dense<0.000000e+00> : vector<64x32xf32>
    %2 = tpu.matmul %0, %1, %cst {dimension_numbers = #tpu.dot_dimension_numbers<[1], [0], [0], [1], [0, 0, 1, 1], [], []>} : vector<64x128xbf16>, vector<128x32xbf16>, vector<64x32xf32> -> vector<64x32xf32>
    %c0_3 = arith.constant 0 : index
    %c0_4 = arith.constant 0 : index
    %3 = vector.load %arg3[%c0_3, %c0_4] : memref<1x32xf32, #tpu.memory_space<vmem>>, vector<1x32xf32>
    %4 = vector.broadcast %3 : vector<1x32xf32> to vector<64x32xf32>
    %5 = arith.addf %2, %4 : vector<64x32xf32>
    %cst_5 = arith.constant 0.000000e+00 : f32
    %6 = vector.broadcast %cst_5 : f32 to vector<64x32xf32>
    %7 = arith.maximumf %5, %6 : vector<64x32xf32>
    %8 = arith.truncf %7 : vector<64x32xf32> to vector<64x32xbf16>
    %c0_6 = arith.constant 0 : index
    %c0_7 = arith.constant 0 : index
    %9 = vector.load %arg4[%c0_6, %c0_7] : memref<32x128xbf16, #tpu.memory_space<vmem>>, vector<32x128xbf16>
    %cst_8 = arith.constant dense<0.000000e+00> : vector<64x128xf32>
    %10 = tpu.matmul %8, %9, %cst_8 {dimension_numbers = #tpu.dot_dimension_numbers<[1], [0], [0], [1], [0, 0, 1, 1], [], []>} : vector<64x32xbf16>, vector<32x128xbf16>, vector<64x128xf32> -> vector<64x128xf32>
    %c0_9 = arith.constant 0 : index
    %c0_10 = arith.constant 0 : index
    %11 = vector.load %arg5[%c0_9, %c0_10] : memref<1x128xf32, #tpu.memory_space<vmem>>, vector<1x128xf32>
    %12 = vector.broadcast %11 : vector<1x128xf32> to vector<64x128xf32>
    %13 = arith.addf %10, %12 : vector<64x128xf32>
    %14 = arith.truncf %13 : vector<64x128xf32> to vector<64x128xbf16>
    %c0_11 = arith.constant 0 : index
    %c0_12 = arith.constant 0 : index
    %15 = vector.load %arg6[%c0_11, %c0_12] : memref<64x128xbf16, #tpu.memory_space<vmem>>, vector<64x128xbf16>
    tpu.vector_store %arg6[%c0_11, %c0_12], %14 {strides = array<i32>} : memref<64x128xbf16, #tpu.memory_space<vmem>>, vector<64x128xbf16>,
    return
  }
  func.func @transform_0(%arg0: i32) -> (i32, i32) {
    %c0_i32 = arith.constant 0 : i32
    %c0_i32_0 = arith.constant 0 : i32
    return %arg0, %c0_i32 : i32, i32
  }
  func.func @transform_1(%arg0: i32) -> (i32, i32) {
    %c0_i32 = arith.constant 0 : i32
    %c0_i32_0 = arith.constant 0 : i32
    %c0_i32_1 = arith.constant 0 : i32
    return %c0_i32, %c0_i32_0 : i32, i32
  }
  func.func @transform_2(%arg0: i32) -> (i32, i32) {
    %c0_i32 = arith.constant 0 : i32
    %c0_i32_0 = arith.constant 0 : i32
    %c0_i32_1 = arith.constant 0 : i32
    return %c0_i32, %c0_i32_0 : i32, i32
  }
  func.func @transform_3(%arg0: i32) -> (i32, i32) {
    %c0_i32 = arith.constant 0 : i32
    %c0_i32_0 = arith.constant 0 : i32
    %c0_i32_1 = arith.constant 0 : i32
    return %c0_i32, %c0_i32_0 : i32, i32
  }
  func.func @transform_4(%arg0: i32) -> (i32, i32) {
    %c0_i32 = arith.constant 0 : i32
    %c0_i32_0 = arith.constant 0 : i32
    %c0_i32_1 = arith.constant 0 : i32
    return %c0_i32, %c0_i32_0 : i32, i32
  }
  func.func @transform_5(%arg0: i32) -> (i32, i32) {
    %c0_i32 = arith.constant 0 : i32
    %c0_i32_0 = arith.constant 0 : i32
    return %arg0, %c0_i32 : i32, i32
  }
}

</mosaic_0001>

<llo_original>
// kernel: tpu_custom_call.1
$region0: #{tpu_custom_call.1}
  #allocation0 [shape = 'u32[]', space=smem, size = 0x4, offset = 0x4, fixed_abs, tag = 'smem constant byte address 0x4 - core index']
  #allocation1 [shape = 'u32[144,128]{1,0:T(1,128)}', space=vmem, size = 0x12000, scoped, tag = 'internal scratch']
  %s0 = inlined_call_operand.vmem [shape: bf16[128,128], index: 0, kind: input, shape index: {}]
  %s1 = inlined_call_operand.vmem [shape: bf16[128,32], index: 1, kind: input, shape index: {}]
  %s2 = inlined_call_operand.vmem [shape: f32[1,32], index: 2, kind: input, shape index: {}]
  %s3 = inlined_call_operand.vmem [shape: bf16[32,128], index: 3, kind: input, shape index: {}]
  %s4 = inlined_call_operand.vmem [shape: f32[1,128], index: 4, kind: input, shape index: {}]
  %s5 = inlined_call_operand.hbm [shape: bf16[128,128], index: 5, kind: output, shape index: {}]
  %s6 = sld [smem:[#allocation0]]
  $region53: #{tpu_custom_call.1} parent=0
    _
  %s8 = ssub.s32 1, %s6
  %s9 = scalar_select 0, %s8, %s6
  $region1: #{tpu_custom_call.1} parent=0
    #allocation2 [shape = 'u8[32768]{0}', space=vmem, size = 0x8000, scoped, tag = 'output window, operand 0']
    #allocation3 [shape = 's32[2]{0}', space=sflag, size = 0x8, scoped, tag = 'scoped memory for tpu_custom_call.1']
    %10 = vsyncpa [#allocation3], 0
    %s11 = scalar_lea.sflag [#allocation3], 1
    %12 = vsyncpa %s11, 0
    loop: start=0, step=1, limit=4
    $region2: #{tpu_custom_call.1} parent=1 // loop_pre_header
      _
    $region3: #{tpu_custom_call.1} parent=1 // loop_header
      %s14 = sphi 0, %s18
      %p15 = scmp.ge.s32.totalorder %s14, 4
      %s24 = sphi 0, %s26
      %s27 = sphi 0, %s24
      %s28 = sphi 0, %s27
      %s44 = sphi 0, %s28
      %s48 = sphi 0, %s48
      %s50 = sphi 0, %s48
      %s51 = sphi 0, %s50
      %s65 = sphi 0, %s51
      %s69 = sphi 0, %s69
      %s71 = sphi 0, %s69
      %s72 = sphi 0, %s71
      %s86 = sphi 0, %s72
      %s90 = sphi 0, %s90
      %s92 = sphi 0, %s90
      %s93 = sphi 0, %s92
      %s107 = sphi 0, %s93
      %s111 = sphi 0, %s111
      %s113 = sphi 0, %s111
      %s114 = sphi 0, %s113
      %s128 = sphi 0, %s114
      %s134 = sphi 0, %s136
      %s137 = sphi 0, %s134
      %s138 = sphi 0, %s137
      %s154 = sphi 0, %s138
    $region4: #{tpu_custom_call.1} parent=1 // loop_header_branch
      %17 = sbr.rel (%p15) target = $region8
    $region5: #{tpu_custom_call.1} parent=1 // loop_body
      %s19 = ssub.s32 %s14, 1
      %s20 = ssub.s32 %s14, 2
      %s21 = sadd.s32 %s14, 1
      %s22 = ssub.s32 %s14, %s21
      %p23 = scmp.eq.s32.totalorder %s22, 0
      %s25 = sadd.s32 %s24, 1
      %s26 = scalar_select %p23, %s24, %s25
      %p29 = pneg %p23
      %p30 = scmp.eq.s32.totalorder %s14, 1
      %p31 = por %p29, %p30
      %p32 = scmp.ne.s32.totalorder %s24, %s27
      %p33 = scmp.eq.s32.totalorder %s14, 0
      %p34 = por %p32, %p33
      %p35 = scmp.ne.s32.totalorder %s24, %s27
      %p36 = scmp.eq.s32.totalorder %s19, 1
      %p37 = por %p35, %p36
      %p38 = scmp.ne.s32.totalorder %s27, %s28
      %p39 = scmp.eq.s32.totalorder %s19, 0
      %p40 = por %p38, %p39
      %p41 = scmp.ne.s32.totalorder %s27, %s28
      %p42 = scmp.eq.s32.totalorder %s20, 1
      %p43 = por %p41, %p42
      %p45 = scmp.ne.s32.totalorder %s28, %s44
      %p46 = scmp.eq.s32.totalorder %s20, 0
      %p47 = por %p45, %p46
      %s49 = sadd.s32 %s48, 1
      %p52 = scmp.eq.s32.totalorder %s14, 1
      %p53 = scmp.ne.s32.totalorder %s48, %s50
      %p54 = scmp.eq.s32.totalorder %s14, 0
      %p55 = por %p53, %p54
      %p56 = scmp.ne.s32.totalorder %s48, %s50
      %p57 = scmp.eq.s32.totalorder %s19, 1
      %p58 = por %p56, %p57
      %p59 = scmp.ne.s32.totalorder %s50, %s51
      %p60 = scmp.eq.s32.totalorder %s19, 0
      %p61 = por %p59, %p60
      %p62 = scmp.ne.s32.totalorder %s50, %s51
      %p63 = scmp.eq.s32.totalorder %s20, 1
      %p64 = por %p62, %p63
      %p66 = scmp.ne.s32.totalorder %s51, %s65
      %p67 = scmp.eq.s32.totalorder %s20, 0
      %p68 = por %p66, %p67
      %s70 = sadd.s32 %s69, 1
      %p73 = scmp.eq.s32.totalorder %s14, 1
      %p74 = scmp.ne.s32.totalorder %s69, %s71
      %p75 = scmp.eq.s32.totalorder %s14, 0
      %p76 = por %p74, %p75
      %p77 = scmp.ne.s32.totalorder %s69, %s71
      %p78 = scmp.eq.s32.totalorder %s19, 1
      %p79 = por %p77, %p78
      %p80 = scmp.ne.s32.totalorder %s71, %s72
      %p81 = scmp.eq.s32.totalorder %s19, 0
      %p82 = por %p80, %p81
      %p83 = scmp.ne.s32.totalorder %s71, %s72
      %p84 = scmp.eq.s32.totalorder %s20, 1
      %p85 = por %p83, %p84
      %p87 = scmp.ne.s32.totalorder %s72, %s86
      %p88 = scmp.eq.s32.totalorder %s20, 0
      %p89 = por %p87, %p88
      %s91 = sadd.s32 %s90, 1
      %p94 = scmp.eq.s32.totalorder %s14, 1
      %p95 = scmp.ne.s32.totalorder %s90, %s92
      %p96 = scmp.eq.s32.totalorder %s14, 0
      %p97 = por %p95, %p96
      %p98 = scmp.ne.s32.totalorder %s90, %s92
      %p99 = scmp.eq.s32.totalorder %s19, 1
      %p100 = por %p98, %p99
      %p101 = scmp.ne.s32.totalorder %s92, %s93
      %p102 = scmp.eq.s32.totalorder %s19, 0
      %p103 = por %p101, %p102
      %p104 = scmp.ne.s32.totalorder %s92, %s93
      %p105 = scmp.eq.s32.totalorder %s20, 1
      %p106 = por %p104, %p105
      %p108 = scmp.ne.s32.totalorder %s93, %s107
      %p109 = scmp.eq.s32.totalorder %s20, 0
      %p110 = por %p108, %p109
      %s112 = sadd.s32 %s111, 1
      %p115 = scmp.eq.s32.totalorder %s14, 1
      %p116 = scmp.ne.s32.totalorder %s111, %s113
      %p117 = scmp.eq.s32.totalorder %s14, 0
      %p118 = por %p116, %p117
      %p119 = scmp.ne.s32.totalorder %s111, %s113
      %p120 = scmp.eq.s32.totalorder %s19, 1
      %p121 = por %p119, %p120
      %p122 = scmp.ne.s32.totalorder %s113, %s114
      %p123 = scmp.eq.s32.totalorder %s19, 0
      %p124 = por %p122, %p123
      %p125 = scmp.ne.s32.totalorder %s113, %s114
      %p126 = scmp.eq.s32.totalorder %s20, 1
      %p127 = por %p125, %p126
      %p129 = scmp.ne.s32.totalorder %s114, %s128
      %p130 = scmp.eq.s32.totalorder %s20, 0
      %p131 = por %p129, %p130
      %s132 = ssub.s32 %s14, %s21
      %p133 = scmp.eq.s32.totalorder %s132, 0
      %s135 = sadd.s32 %s134, 1
      %s136 = scalar_select %p133, %s134, %s135
      %p139 = pneg %p133
      %p140 = scmp.eq.s32.totalorder %s14, 1
      %p141 = por %p139, %p140
      %p142 = scmp.ne.s32.totalorder %s134, %s137
      %p143 = scmp.eq.s32.totalorder %s14, 0
      %p144 = por %p142, %p143
      %p145 = scmp.ne.s32.totalorder %s134, %s137
      %p146 = scmp.eq.s32.totalorder %s19, 1
      %p147 = por %p145, %p146
      %p148 = scmp.ne.s32.totalorder %s137, %s138
      %p149 = scmp.eq.s32.totalorder %s19, 0
      %p150 = por %p148, %p149
      %p151 = scmp.ne.s32.totalorder %s137, %s138
      %p152 = scmp.eq.s32.totalorder %s20, 1
      %p153 = por %p151, %p152
      %p155 = scmp.ne.s32.totalorder %s138, %s154
      %p156 = scmp.eq.s32.totalorder %s20, 0
      %p157 = por %p155, %p156
      %p158 = scmp.le.s32.totalorder 1, %s14
      %p159 = scmp.lt.s32.totalorder %s14, 3
      %p160 = pnand %p158, %p159
      %p161 = pneg %p160
      // Predicated region
      $region9: #{tpu_custom_call.1} parent=5 // pred_check
        _
      $region10: #{tpu_custom_call.1} parent=5 // pred_check_branch
        %163 = sbr.rel (%p160) target = $region12
      $region11: #{tpu_custom_call.1} parent=5 // pred_region
        %s164 = ssub.s32 %s14, 1
        // Predicated region
        $region13: #{tpu_custom_call.1} parent=11 // pred_check
          %p165 = pneg %p61
        $region14: #{tpu_custom_call.1} parent=11 // pred_check_branch
          %167 = sbr.rel (%p165) target = $region16
        $region15: #{tpu_custom_call.1} parent=11 // pred_region
          _
        $region16: #{tpu_custom_call.1} parent=11 // pred_fallthru
          _
        // Predicated region
        $region17: #{tpu_custom_call.1} parent=11 // pred_check
          %p168 = pneg %p82
        $region18: #{tpu_custom_call.1} parent=11 // pred_check_branch
          %170 = sbr.rel (%p168) target = $region20
        $region19: #{tpu_custom_call.1} parent=11 // pred_region
          _
        $region20: #{tpu_custom_call.1} parent=11 // pred_fallthru
          _
        // Predicated region
        $region21: #{tpu_custom_call.1} parent=11 // pred_check
          %p171 = pneg %p103
        $region22: #{tpu_custom_call.1} parent=11 // pred_check_branch
          %173 = sbr.rel (%p171) target = $region24
        $region23: #{tpu_custom_call.1} parent=11 // pred_region
          _
        $region24: #{tpu_custom_call.1} parent=11 // pred_fallthru
          _
        // Predicated region
        $region25: #{tpu_custom_call.1} parent=11 // pred_check
          %p174 = pneg %p124
        $region26: #{tpu_custom_call.1} parent=11 // pred_check_branch
          %176 = sbr.rel (%p174) target = $region28
        $region27: #{tpu_custom_call.1} parent=11 // pred_region
          _
        $region28: #{tpu_custom_call.1} parent=11 // pred_fallthru
          _
      $region12: #{tpu_custom_call.1} parent=5 // pred_fallthru
        _
      %p177 = scmp.lt.s32.totalorder %s14, 2
      // Predicated region
      $region29: #{tpu_custom_call.1} parent=5 // pred_check
        %p178 = pneg %p177
      $region30: #{tpu_custom_call.1} parent=5 // pred_check_branch
        %180 = sbr.rel (%p178) target = $region32
      $region31: #{tpu_custom_call.1} parent=5 // pred_region
        // Predicated region
        $region33: #{tpu_custom_call.1} parent=31 // pred_check
          %p181 = pneg %p34
        $region34: #{tpu_custom_call.1} parent=31 // pred_check_branch
          %183 = sbr.rel (%p181) target = $region36
        $region35: #{tpu_custom_call.1} parent=31 // pred_region
          %s184 = smul.u32 8, %s14
          %p185 = scmp.lt.s32.totalorder %s184, 15
          %s186 = scalar_select %p185, %s184, 15
          %s187 = smul.addr %s186, 4
          %s188 = scalar_lea.vmem %s0, %s187
          %s189 = smul.u32 8, %s14
        $region36: #{tpu_custom_call.1} parent=31 // pred_fallthru
          _
      $region32: #{tpu_custom_call.1} parent=5 // pred_fallthru
        _
      %p190 = scmp.le.s32.totalorder 1, %s14
      %p191 = scmp.lt.s32.totalorder %s14, 3
      %p192 = pnand %p190, %p191
      %p193 = pneg %p192
      // Predicated region
      $region37: #{tpu_custom_call.1} parent=5 // pred_check
        _
      $region38: #{tpu_custom_call.1} parent=5 // pred_check_branch
        %195 = sbr.rel (%p192) target = $region40
      $region39: #{tpu_custom_call.1} parent=5 // pred_region
        %s196 = ssub.s32 %s14, 1
        %s197 = smul.u32 8, %s19
        %p198 = scmp.lt.s32.totalorder %s197, 15
        %s199 = scalar_select %p198, %s197, 15
        %s200 = smul.addr %s199, 4
        %s201 = scalar_lea.vmem %s0, %s200
        %p202 = pneg %p40
        %p203 = pneg %p37
        %p204 = pneg %p61
        %p205 = pneg %p58
        %p206 = pneg %p82
        %p207 = pneg %p79
        %p208 = pneg %p103
        %p209 = pneg %p100
        %p210 = pneg %p124
        %p211 = pneg %p121
        %p212 = pneg %p150
        %p213 = pneg %p147
        %s214 = sand.u32 %s137, 1
        %s215 = scalar_lea.sflag [#allocation3], %s214
        %s216 = sand.u32 %s137, 1
        %s217 = smul.addr %s216, 32
        %s218 = scalar_lea.vmem [#allocation2], %s217
        %s219 = smul.u32 8, %s19
        %p220 = scmp.lt.s32.totalorder %s219, 15
        %s221 = scalar_select %p220, %s219, 15
        %s222 = smul.addr %s221, 4
        %s223 = scalar_lea.vmem %s0, %s222
        %s224 = smul.u32 8, %s19
        %s225 = smul.u32 8, %s19
        %v227 = vld [vmem:[%s223] sm:$0xf]
        %v228 = vld [vmem:[%s223 + $0x4] sm:$0xf]
        %v229 = vld [vmem:[%s223 + $0x8] sm:$0xf]
        %v230 = vld [vmem:[%s223 + $0xc] sm:$0xf]
        %v231 = vld [vmem:[%s223 + $0x10] sm:$0xf]
        %v232 = vld [vmem:[%s223 + $0x14] sm:$0xf]
        %v233 = vld [vmem:[%s223 + $0x18] sm:$0xf]
        %v234 = vld [vmem:[%s223 + $0x1c] sm:$0xf]
        %v235 = vld [vmem:[%s1] sm:$0xf]
        %v236 = vld [vmem:[%s1 + $0x4] sm:$0xf]
        %v237 = vld [vmem:[%s1 + $0x8] sm:$0xf]
        %v238 = vld [vmem:[%s1 + $0xc] sm:$0xf]
        %v239 = vld [vmem:[%s1 + $0x10] sm:$0xf]
        %v240 = vld [vmem:[%s1 + $0x14] sm:$0xf]
        %v241 = vld [vmem:[%s1 + $0x18] sm:$0xf]
        %v242 = vld [vmem:[%s1 + $0x1c] sm:$0xf]
        %v243 = vld [vmem:[%s1 + $0x20] sm:$0xf]
        %v244 = vld [vmem:[%s1 + $0x24] sm:$0xf]
        %v245 = vld [vmem:[%s1 + $0x28] sm:$0xf]
        %v246 = vld [vmem:[%s1 + $0x2c] sm:$0xf]
        %v247 = vld [vmem:[%s1 + $0x30] sm:$0xf]
        %v248 = vld [vmem:[%s1 + $0x34] sm:$0xf]
        %v249 = vld [vmem:[%s1 + $0x38] sm:$0xf]
        %v250 = vld [vmem:[%s1 + $0x3c] sm:$0xf]
        %v251 = vld [vmem:[%s2] sm:$0x1]
        %v253 = vlaneseq
        %v254 = vshrl.u32 %v253, 7
        %v255 = vsub.s32 0, %v254
        %v256 = vrot.slane %v251, %v255
        %v266 = vunpack.c.l.b16 %v227
        %v267 = vunpack.c.l.b16 %v228
        %v268 = vunpack.c.l.b16 %v229
        %v269 = vunpack.c.l.b16 %v230
        %v270 = vunpack.c.l.b16 %v231
        %v271 = vunpack.c.l.b16 %v232
        %v272 = vunpack.c.l.b16 %v233
        %v273 = vunpack.c.l.b16 %v234
        %v274 = vpack.c.b16 %v267, %v266
        %v275 = vpack.c.b16 %v269, %v268
        %v276 = vpack.c.b16 %v271, %v270
        %v277 = vpack.c.b16 %v273, %v272
        %v298 = vunpack.c.l.b16 %v235
        %v299 = vunpack.c.l.b16 %v236
        %v300 = vunpack.c.l.b16 %v237
        %v301 = vunpack.c.l.b16 %v238
        %v302 = vunpack.c.l.b16 %v239
        %v303 = vunpack.c.l.b16 %v240
        %v304 = vunpack.c.l.b16 %v241
        %v305 = vunpack.c.l.b16 %v242
        %v306 = vunpack.c.l.b16 %v243
        %v307 = vunpack.c.l.b16 %v244
        %v308 = vunpack.c.l.b16 %v245
        %v309 = vunpack.c.l.b16 %v246
        %v310 = vunpack.c.l.b16 %v247
        %v311 = vunpack.c.l.b16 %v248
        %v312 = vunpack.c.l.b16 %v249
        %v313 = vunpack.c.l.b16 %v250
        %v314 = vpack.c.b16 %v299, %v298
        %v315 = vpack.c.b16 %v301, %v300
        %v316 = vpack.c.b16 %v303, %v302
        %v317 = vpack.c.b16 %v305, %v304
        %v318 = vpack.c.b16 %v307, %v306
        %v319 = vpack.c.b16 %v309, %v308
        %v320 = vpack.c.b16 %v311, %v310
        %v321 = vpack.c.b16 %v313, %v312
        %330 = vmatprep.subr.bf16.mxu0 0
        %331 = vmatpush1.bf16.msra.mxu0 %v314
        %332 = vmatprep.subr.bf16.mxu0 0
        %333 = vmatpush1.bf16.msra.mxu0 %v315
        %334 = vmatprep.subr.bf16.mxu0 0
        %335 = vmatpush1.bf16.msra.mxu0 %v316
        %336 = vmatprep.subr.bf16.mxu0 0
        %337 = vmatpush1.bf16.msra.mxu0 %v317
        %338 = vmatprep.subr.bf16.mxu0 0
        %339 = vmatpush1.bf16.msra.mxu0 %v318
        %340 = vmatprep.subr.bf16.mxu0 0
        %341 = vmatpush1.bf16.msra.mxu0 %v319
        %342 = vmatprep.subr.bf16.mxu0 0
        %343 = vmatpush1.bf16.msra.mxu0 %v320
        %344 = vmatprep.subr.bf16.mxu0 0
        %345 = vmatpush1.bf16.msra.mxu0 %v321
        %346 = vmatprep.subr.bf16.mxu0 0
        %347 = vmatpush1.bf16.msra.mxu0 0
        %348 = vmatprep.subr.bf16.mxu0 0
        %349 = vmatpush1.bf16.msra.mxu0 0
        %350 = vmatprep.subr.bf16.mxu0 0
        %351 = vmatpush1.bf16.msra.mxu0 0
        %352 = vmatprep.subr.bf16.mxu0 0
        %353 = vmatpush1.bf16.msra.mxu0 0
        %354 = vmatprep.subr.bf16.mxu0 0
        %355 = vmatpush1.bf16.msra.mxu0 0
        %356 = vmatprep.subr.bf16.mxu0 0
        %357 = vmatpush1.bf16.msra.mxu0 0
        %358 = vmatprep.subr.bf16.mxu0 0
        %359 = vmatpush1.bf16.msra.mxu0 0
        %360 = vmatprep.subr.bf16.mxu0 0
        %361 = vmatpush1.bf16.msra.mxu0 0
        %362 = vmatprep.mubr.bf16.mxu0 0
        %363 = vmatmul.mubr.bf16.gmra.mrb[0].mxu0 %v274
        %v364 = vpop.f32.mrb[0].mxu0
        %v365 = vadd.f32 %v256, %v364
        %v366 = vpop.f32.mrb[0].mxu0
        %v367 = vpop.f32.mrb[0].mxu0
        %v368 = vadd.f32 %v256, %v367
        %v369 = vpop.f32.mrb[0].mxu0
        %370 = vmatprep.mubr.bf16.mxu0 0
        %371 = vmatmul.mubr.bf16.gmra.mrb[0].mxu0 %v275
        %v372 = vpop.f32.mrb[0].mxu0
        %v373 = vadd.f32 %v256, %v372
        %v374 = vpop.f32.mrb[0].mxu0
        %v375 = vpop.f32.mrb[0].mxu0
        %v376 = vadd.f32 %v256, %v375
        %v377 = vpop.f32.mrb[0].mxu0
        %378 = vmatprep.mubr.bf16.mxu0 0
        %379 = vmatmul.mubr.bf16.gmra.mrb[0].mxu0 %v276
        %v380 = vpop.f32.mrb[0].mxu0
        %v381 = vadd.f32 %v256, %v380
        %v382 = vpop.f32.mrb[0].mxu0
        %v383 = vpop.f32.mrb[0].mxu0
        %v384 = vadd.f32 %v256, %v383
        %v385 = vpop.f32.mrb[0].mxu0
        %386 = vmatprep.mubr.bf16.mxu0 0
        %387 = vmatmul.mubr.bf16.gmra.mrb[0].mxu0 %v277
        %v388 = vpop.f32.mrb[0].mxu0
        %v389 = vadd.f32 %v256, %v388
        %v390 = vpop.f32.mrb[0].mxu0
        %v391 = vpop.f32.mrb[0].mxu0
        %v392 = vadd.f32 %v256, %v391
        %v393 = vpop.f32.mrb[0].mxu0
        %394 = vdwg.mxu0
        %v395 = vmax.f32 %v365, 0.0
        %v396 = vmax.f32 %v368, 0.0
        %v397 = vmax.f32 %v373, 0.0
        %v398 = vmax.f32 %v376, 0.0
        %v399 = vmax.f32 %v381, 0.0
        %v400 = vmax.f32 %v384, 0.0
        %v401 = vmax.f32 %v389, 0.0
        %v402 = vmax.f32 %v392, 0.0
        %v403 = vpack.c.bf16 %v396, %v395
        %v404 = vpack.c.bf16 %v398, %v397
        %v405 = vpack.c.bf16 %v400, %v399
        %v406 = vpack.c.bf16 %v402, %v401
        %v407 = vld [vmem:[%s3] sm:$0xf]
        %v408 = vld [vmem:[%s3 + $0x4] sm:$0xf]
        %v409 = vld [vmem:[%s3 + $0x8] sm:$0xf]
        %v410 = vld [vmem:[%s3 + $0xc] sm:$0xf]
        %v411 = vld [vmem:[%s4] sm:$0x1]
        %v413 = vlaneseq
        %v414 = vshrl.u32 %v413, 7
        %v415 = vsub.s32 0, %v414
        %v416 = vrot.slane %v411, %v415
        %v422 = vunpack.c.l.b16 %v407
        %v423 = vunpack.c.l.b16 %v408
        %v424 = vunpack.c.l.b16 %v409
        %v425 = vunpack.c.l.b16 %v410
        %v426 = vpack.c.b16 %v423, %v422
        %v427 = vpack.c.b16 %v425, %v424
        %vm430 = vcmask 261120
        %v432 = vsel %vm430, %v403, 0
        %v435 = vsel %vm430, %v404, 0
        %v438 = vsel %vm430, %v405, 0
        %v441 = vsel %vm430, %v406, 0
        %443 = vmatprep.subr.bf16.mxu0 0
        %444 = vmatpush1.bf16.msra.mxu0 %v426
        %445 = vmatprep.subr.bf16.mxu0 0
        %446 = vmatpush1.bf16.msra.mxu0 %v427
        %447 = vmatprep.subr.bf16.mxu0 0
        %448 = vmatpush1.bf16.msra.mxu0 0
        %449 = vmatprep.subr.bf16.mxu0 0
        %450 = vmatpush1.bf16.msra.mxu0 0
        %451 = vmatprep.subr.bf16.mxu0 0
        %452 = vmatpush1.bf16.msra.mxu0 0
        %453 = vmatprep.subr.bf16.mxu0 0
        %454 = vmatpush1.bf16.msra.mxu0 0
        %455 = vmatprep.subr.bf16.mxu0 0
        %456 = vmatpush1.bf16.msra.mxu0 0
        %457 = vmatprep.subr.bf16.mxu0 0
        %458 = vmatpush1.bf16.msra.mxu0 0
        %459 = vmatprep.subr.bf16.mxu0 0
        %460 = vmatpush1.bf16.msra.mxu0 0
        %461 = vmatprep.subr.bf16.mxu0 0
        %462 = vmatpush1.bf16.msra.mxu0 0
        %463 = vmatprep.subr.bf16.mxu0 0
        %464 = vmatpush1.bf16.msra.mxu0 0
        %465 = vmatprep.subr.bf16.mxu0 0
        %466 = vmatpush1.bf16.msra.mxu0 0
        %467 = vmatprep.subr.bf16.mxu0 0
        %468 = vmatpush1.bf16.msra.mxu0 0
        %469 = vmatprep.subr.bf16.mxu0 0
        %470 = vmatpush1.bf16.msra.mxu0 0
        %471 = vmatprep.subr.bf16.mxu0 0
        %472 = vmatpush1.bf16.msra.mxu0 0
        %473 = vmatprep.subr.bf16.mxu0 0
        %474 = vmatpush1.bf16.msra.mxu0 0
        %475 = vmatprep.mubr.bf16.mxu0 0
        %476 = vmatmul.mubr.bf16.gmra.mrb[0].mxu0 %v432
        %v477 = vpop.f32.mrb[0].mxu0
        %v478 = vadd.f32 %v416, %v477
        %v479 = vpop.f32.mrb[0].mxu0
        %v480 = vpop.f32.mrb[0].mxu0
        %v481 = vadd.f32 %v416, %v480
        %v482 = vpop.f32.mrb[0].mxu0
        %483 = vmatprep.mubr.bf16.mxu0 0
        %484 = vmatmul.mubr.bf16.gmra.mrb[0].mxu0 %v435
        %v485 = vpop.f32.mrb[0].mxu0
        %v486 = vadd.f32 %v416, %v485
        %v487 = vpop.f32.mrb[0].mxu0
        %v488 = vpop.f32.mrb[0].mxu0
        %v489 = vadd.f32 %v416, %v488
        %v490 = vpop.f32.mrb[0].mxu0
        %491 = vmatprep.mubr.bf16.mxu0 0
        %492 = vmatmul.mubr.bf16.gmra.mrb[0].mxu0 %v438
        %v493 = vpop.f32.mrb[0].mxu0
        %v494 = vadd.f32 %v416, %v493
        %v495 = vpop.f32.mrb[0].mxu0
        %v496 = vpop.f32.mrb[0].mxu0
        %v497 = vadd.f32 %v416, %v496
        %v498 = vpop.f32.mrb[0].mxu0
        %499 = vmatprep.mubr.bf16.mxu0 0
        %500 = vmatmul.mubr.bf16.gmra.mrb[0].mxu0 %v441
        %v501 = vpop.f32.mrb[0].mxu0
        %v502 = vadd.f32 %v416, %v501
        %v503 = vpop.f32.mrb[0].mxu0
        %v504 = vpop.f32.mrb[0].mxu0
        %v505 = vadd.f32 %v416, %v504
        %v506 = vpop.f32.mrb[0].mxu0
        %507 = vdwg.mxu0
        %v508 = vpack.c.bf16 %v481, %v478
        %v509 = vpack.c.bf16 %v489, %v486
        %v510 = vpack.c.bf16 %v497, %v494
        %v511 = vpack.c.bf16 %v505, %v502
        %v516 = vunpack.c.l.b16 %v508
        %v517 = vunpack.c.h.b16 %v508
        %v518 = vunpack.c.l.b16 %v509
        %v519 = vunpack.c.h.b16 %v509
        %v520 = vunpack.c.l.b16 %v510
        %v521 = vunpack.c.h.b16 %v510
        %v522 = vunpack.c.l.b16 %v511
        %v523 = vunpack.c.h.b16 %v511
        %v524 = vpack.c.b16 %v516, %v516
        %v525 = vpack.c.b16 %v517, %v517
        %v526 = vpack.c.b16 %v518, %v518
        %v527 = vpack.c.b16 %v519, %v519
        %v528 = vpack.c.b16 %v520, %v520
        %v529 = vpack.c.b16 %v521, %v521
        %v530 = vpack.c.b16 %v522, %v522
        %v531 = vpack.c.b16 %v523, %v523
        %540 = vst [vmem:[%s218] sm:$0xf] %v524
        %541 = vst [vmem:[%s218 + $0x4] sm:$0xf] %v525
        %542 = vst [vmem:[%s218 + $0x8] sm:$0xf] %v526
        %543 = vst [vmem:[%s218 + $0xc] sm:$0xf] %v527
        %544 = vst [vmem:[%s218 + $0x10] sm:$0xf] %v528
        %545 = vst [vmem:[%s218 + $0x14] sm:$0xf] %v529
        %546 = vst [vmem:[%s218 + $0x18] sm:$0xf] %v530
        %547 = vst [vmem:[%s218 + $0x1c] sm:$0xf] %v531
        %s548 = sand.u32 %s137, 1
        %s549 = scalar_lea.sflag [#allocation3], %s548
        %s550 = sand.u32 %s137, 1
        %s551 = smul.addr %s550, 32
        %s552 = scalar_lea.vmem [#allocation2], %s551
        // Predicated region
        $region41: #{tpu_custom_call.1} parent=39 // pred_check
          %p553 = pneg %p147
        $region42: #{tpu_custom_call.1} parent=39 // pred_check_branch
          %555 = sbr.rel (%p553) target = $region44
        $region43: #{tpu_custom_call.1} parent=39 // pred_region
          %s556 = smul.u32 8, %s19
          %s558 = ssub.s32 512, 512
          %559 = vsyncadd %s549, %s558
          %s560 = smul.addr %s556, 64
          %s561 = scalar_lea.hbm %s5, %s560
          %s562 = sshll.u32 %s552, 4
          %s563 = int_to_ptr.vmem [resolvable:$true] %s562
          %568 = dma.vmem_to_hbm [thread:$0]  %s563, 512, %s561, %s549, 64, 64, 4
        $region44: #{tpu_custom_call.1} parent=39 // pred_fallthru
          _
      $region40: #{tpu_custom_call.1} parent=5 // pred_fallthru
        _
      %p569 = scmp.le.s32.totalorder 2, %s14
      // Predicated region
      $region45: #{tpu_custom_call.1} parent=5 // pred_check
        %p570 = pneg %p569
      $region46: #{tpu_custom_call.1} parent=5 // pred_check_branch
        %572 = sbr.rel (%p570) target = $region48
      $region47: #{tpu_custom_call.1} parent=5 // pred_region
        %s573 = ssub.s32 %s14, 2
        // Predicated region
        $region49: #{tpu_custom_call.1} parent=47 // pred_check
          %p574 = pneg %p153
        $region50: #{tpu_custom_call.1} parent=47 // pred_check_branch
          %576 = sbr.rel (%p574) target = $region52
        $region51: #{tpu_custom_call.1} parent=47 // pred_region
          %s577 = sand.u32 %s138, 1
          %s578 = scalar_lea.sflag [#allocation3], %s577
          %s579 = sand.u32 %s138, 1
          %s580 = smul.addr %s579, 32
          %s581 = scalar_lea.vmem [#allocation2], %s580
          %582 = dma.done %s578, 512
        $region52: #{tpu_custom_call.1} parent=47 // pred_fallthru
          _
      $region48: #{tpu_custom_call.1} parent=5 // pred_fallthru
        _
    $region6: #{tpu_custom_call.1} parent=1 // loop_footer
      %s18 = sadd.s32 1, %s14
    $region7: #{tpu_custom_call.1} parent=1 // loop_footer_branch
      %13 = sbr.rel target = $region3
    $region8: #{tpu_custom_call.1} parent=1 // loop_exit
      _
    %583 = vsyncpa [#allocation3], 1
    %s584 = scalar_lea.sflag [#allocation3], 1
    %585 = vsyncpa %s584, 1

</llo_original>
